<compile_context>
chip_gen: v6e
topology: v6e:2x2x1
jax: 0.10.0
libtpu: 0.0.40
codegen_flags: <defaults>
</compile_context>

<pallas_src>
import jax
import jax.numpy as jnp
from jax.experimental import pallas as pl
from jax.experimental.pallas import tpu as pltpu

IN_DIM = 64
HID_DIM = 128
OUT_DIM = 64


def _round_up(n, m):
    return ((n + m - 1) // m) * m


def _fused_affine_kernel(x_ref, w_ref, b_ref, o_ref):
    # x_ref: (bm, 64)   w_ref: (64, 128)   b_ref: (1, 128)   o_ref: (bm, 128)
    acc = jnp.dot(x_ref[...], w_ref[...], preferred_element_type=jnp.float32)
    o_ref[...] = (acc + b_ref[...]).astype(o_ref.dtype)


def model_forward(x, w1, b1, w2, b2, *, bm=None):
    """x: (B, 64) -> (B, 128) with the padded-add semantics documented above.

    Weights are stored as (in_features, out_features), i.e. the kernel computes
    x @ W + b (equivalent to PyTorch's x @ W.T with W of shape (out, in)).
    """
    B = x.shape[0]

    # ---- one-time weight fusion (tiny, done in plain JAX outside the kernel) ----
    # pad W2: (128, 64) -> (128, 128) with zero columns; same for b2.
    w2_pad = jnp.zeros((HID_DIM, HID_DIM), jnp.float32).at[:, :OUT_DIM].set(w2)
    b2_pad = jnp.zeros((1, HID_DIM), jnp.float32).at[:, :OUT_DIM].set(b2)
    m = jnp.eye(HID_DIM, dtype=jnp.float32) + w2_pad          # (128, 128)
    w_eff = (w1.astype(jnp.float32) @ m)                       # (64, 128)
    b_eff = (b1.astype(jnp.float32) @ m) + b2_pad              # (1, 128)
    w_eff = w_eff.astype(x.dtype)
    b_eff = b_eff.astype(jnp.float32)

    # ---- batch tiling: fixed tile, multiple of 8 sublanes, capped at 512 ----
    if bm is None:
        bm = min(512, _round_up(B, 8))
    bm = max(8, _round_up(bm, 8))
    B_pad = _round_up(B, bm)
    if B_pad != B:
        x = jnp.pad(x, ((0, B_pad - B), (0, 0)))

    grid = (B_pad // bm,)
    out = pl.pallas_call(
        _fused_affine_kernel,
        out_shape=jax.ShapeDtypeStruct((B_pad, HID_DIM), x.dtype),
        grid_spec=pltpu.PrefetchScalarGridSpec(
            num_scalar_prefetch=0,
            grid=grid,
            in_specs=[
                pl.BlockSpec((bm, IN_DIM), lambda i: (i, 0)),        # x tile
                pl.BlockSpec((IN_DIM, HID_DIM), lambda i: (0, 0)),   # W_eff (resident)
                pl.BlockSpec((1, HID_DIM), lambda i: (0, 0)),        # b_eff (resident)
            ],
            out_specs=pl.BlockSpec((bm, HID_DIM), lambda i: (i, 0)),
        ),
        compiler_params=pltpu.CompilerParams(
            dimension_semantics=("parallel",),
        ),
    )(x, w_eff, b_eff)

    if B_pad != B:
        out = out[:B]
    return out


def init_params(key):
    """Deterministic init mimicking nn.Linear defaults (U(-1/sqrt(fan_in), +))."""
    k1, k2, k3, k4 = jax.random.split(key, 4)
    bound1 = 1.0 / jnp.sqrt(IN_DIM)
    bound2 = 1.0 / jnp.sqrt(HID_DIM)
    w1 = jax.random.uniform(k1, (IN_DIM, HID_DIM), jnp.float32, -bound1, bound1)
    b1 = jax.random.uniform(k2, (1, HID_DIM), jnp.float32, -bound1, bound1)
    w2 = jax.random.uniform(k3, (HID_DIM, OUT_DIM), jnp.float32, -bound2, bound2)
    b2 = jax.random.uniform(k4, (1, OUT_DIM), jnp.float32, -bound2, bound2)
    return w1, b1, w2, b2


def _reference(x, w1, b1, w2, b2):
    # Pure-JAX reference with the same padded-add semantics.
    x1 = x @ w1 + b1
    x2 = x1 @ w2 + b2
    return x1.at[:, :OUT_DIM].add(x2)


if __name__ == "__main__":
    key = jax.random.PRNGKey(0)
    k_x, k_x2, k_p = jax.random.split(key, 3)
    w1, b1, w2, b2 = init_params(k_p)

    # Small batch (single tile).
    B = 8
    x = jax.random.normal(k_x, (B, IN_DIM), jnp.float32)
    out = jax.block_until_ready(model_forward(x, w1, b1, w2, b2))
    ref = _reference(x, w1, b1, w2, b2)
    assert out.shape == (B, HID_DIM)
    assert jnp.allclose(out, ref, atol=1e-4, rtol=1e-4)

    # Ragged batch (exercises the zero-pad-to-tile path).
    B2 = 20
    x2_in = jax.random.normal(k_x2, (B2, IN_DIM), jnp.float32)
    out2 = jax.block_until_ready(model_forward(x2_in, w1, b1, w2, b2))
    ref2 = _reference(x2_in, w1, b1, w2, b2)
    assert out2.shape == (B2, HID_DIM)
    assert jnp.allclose(out2, ref2, atol=1e-4, rtol=1e-4)

    print("KERNEL_OK")
</pallas_src>

<mosaic_0001>
module attributes {stable_mosaic.version = 11 : i64} {
  func.func @_fused_affine_kernel(%arg0: i32, %arg1: memref<8x64xf32, #tpu.memory_space<vmem>>, %arg2: memref<64x128xf32, #tpu.memory_space<vmem>>, %arg3: memref<1x128xf32, #tpu.memory_space<vmem>>, %arg4: memref<8x128xf32, #tpu.memory_space<vmem>>) attributes {dimension_semantics = [#tpu.dimension_semantics<parallel>], iteration_bounds = array<i64: 1>, scalar_prefetch = 0 : i64, scratch_operands = 0 : i64, tpu.core_type = #tpu.core_type<tc>, window_params = [{transform_indices = @transform_0, window_bounds = array<i64: 8, 64>}, {pipeline_mode = #tpu.pipeline_mode<synchronous>, transform_indices = @transform_1, window_bounds = array<i64: 64, 128>}, {pipeline_mode = #tpu.pipeline_mode<synchronous>, transform_indices = @transform_2, window_bounds = array<i64: 1, 128>}, {transform_indices = @transform_3, window_bounds = array<i64: 8, 128>}]} {
    %c0 = arith.constant 0 : index
    %c0_0 = arith.constant 0 : index
    %0 = vector.load %arg1[%c0, %c0_0] : memref<8x64xf32, #tpu.memory_space<vmem>>, vector<8x64xf32>
    %c0_1 = arith.constant 0 : index
    %c0_2 = arith.constant 0 : index
    %1 = vector.load %arg2[%c0_1, %c0_2] : memref<64x128xf32, #tpu.memory_space<vmem>>, vector<64x128xf32>
    %cst = arith.constant dense<0.000000e+00> : vector<8x128xf32>
    %2 = tpu.matmul %0, %1, %cst {dimension_numbers = #tpu.dot_dimension_numbers<[1], [0], [0], [1], [0, 0, 1, 1], [], []>} : vector<8x64xf32>, vector<64x128xf32>, vector<8x128xf32> -> vector<8x128xf32>
    %c0_3 = arith.constant 0 : index
    %c0_4 = arith.constant 0 : index
    %3 = vector.load %arg3[%c0_3, %c0_4] : memref<1x128xf32, #tpu.memory_space<vmem>>, vector<1x128xf32>
    %4 = vector.broadcast %3 : vector<1x128xf32> to vector<8x128xf32>
    %5 = arith.addf %2, %4 : vector<8x128xf32>
    %c0_5 = arith.constant 0 : index
    %c0_6 = arith.constant 0 : index
    %6 = vector.load %arg4[%c0_5, %c0_6] : memref<8x128xf32, #tpu.memory_space<vmem>>, vector<8x128xf32>
    tpu.vector_store %arg4[%c0_5, %c0_6], %5 {strides = array<i32>} : memref<8x128xf32, #tpu.memory_space<vmem>>, vector<8x128xf32>,
    return
  }
  func.func @transform_0(%arg0: i32) -> (i32, i32) {
    %c0_i32 = arith.constant 0 : i32
    %c0_i32_0 = arith.constant 0 : i32
    return %arg0, %c0_i32 : i32, i32
  }
  func.func @transform_1(%arg0: i32) -> (i32, i32) {
    %c0_i32 = arith.constant 0 : i32
    %c0_i32_0 = arith.constant 0 : i32
    %c0_i32_1 = arith.constant 0 : i32
    return %c0_i32, %c0_i32_0 : i32, i32
  }
  func.func @transform_2(%arg0: i32) -> (i32, i32) {
    %c0_i32 = arith.constant 0 : i32
    %c0_i32_0 = arith.constant 0 : i32
    %c0_i32_1 = arith.constant 0 : i32
    return %c0_i32, %c0_i32_0 : i32, i32
  }
  func.func @transform_3(%arg0: i32) -> (i32, i32) {
    %c0_i32 = arith.constant 0 : i32
    %c0_i32_0 = arith.constant 0 : i32
    return %arg0, %c0_i32 : i32, i32
  }
}

</mosaic_0001>

<llo_original>
// kernel: tpu_custom_call.1
$region0: #{tpu_custom_call.1}
  #allocation0 [shape = 'u32[]', space=smem, size = 0x4, offset = 0x4, fixed_abs, tag = 'smem constant byte address 0x4 - core index']
  #allocation1 [shape = 'u32[144,128]{1,0:T(1,128)}', space=vmem, size = 0x12000, scoped, tag = 'internal scratch']
  %s0 = inlined_call_operand.hbm [shape: f32[8,64], index: 0, kind: input, shape index: {}]
  %s1 = inlined_call_operand.hbm [shape: f32[64,128], index: 1, kind: input, shape index: {}]
  %s2 = inlined_call_operand.vmem [shape: f32[1,128], index: 2, kind: input, shape index: {}]
  %s3 = inlined_call_operand.hbm [shape: f32[8,128], index: 3, kind: output, shape index: {}]
  %s4 = sld [smem:[#allocation0]]
  $region30: #{tpu_custom_call.1} parent=0
    _
  %s6 = ssub.s32 1, %s4
  %s7 = scalar_select 0, %s6, %s4
  $region1: #{tpu_custom_call.1} parent=0
    #allocation2 [shape = 'u8[4096]{0}', space=vmem, size = 0x1000, scoped, tag = 'input window, operand 0, single buffered']
    #allocation3 [shape = 's32[1]{0}', space=sflag, size = 0x4, scoped, tag = 'scoped memory for tpu_custom_call.1']
    #allocation4 [shape = 's32[1]{0}', space=sflag, size = 0x4, scoped, tag = 'scoped memory for tpu_custom_call.1']
    #allocation5 [shape = 'u8[32768]{0}', space=vmem, size = 0x8000, scoped, tag = 'input window, operand 1, single buffered']
    #allocation6 [shape = 's32[1]{0}', space=sflag, size = 0x4, scoped, tag = 'scoped memory for tpu_custom_call.1']
    #allocation7 [shape = 'u8[4096]{0}', space=vmem, size = 0x1000, scoped, tag = 'output window, operand 0, single buffered']
    %8 = vsyncpa [#allocation3], 0
    %9 = vsyncpa [#allocation6], 0
    %10 = vsyncpa [#allocation4], 0
    // Predicated region
    $region2: #{tpu_custom_call.1} parent=1 // pred_check
      _
    $region3: #{tpu_custom_call.1} parent=1 // pred_check_branch
      %12 = sbr.rel (0) target = $region5
    $region4: #{tpu_custom_call.1} parent=1 // pred_region
      %s14 = ssub.s32 128, 128
      %15 = vsyncadd [#allocation3], %s14
      %s17 = sshll.u32 [#allocation2], 4
      %s18 = int_to_ptr.vmem [resolvable:$true] %s17
      %20 = dma.hbm_to_vmem [thread:$0]  %s0, 128, %s18, [#allocation3]
    $region5: #{tpu_custom_call.1} parent=1 // pred_fallthru
      _
    // Predicated region
    $region6: #{tpu_custom_call.1} parent=1 // pred_check
      _
    $region7: #{tpu_custom_call.1} parent=1 // pred_check_branch
      %22 = sbr.rel (0) target = $region9
    $region8: #{tpu_custom_call.1} parent=1 // pred_region
      %s24 = ssub.s32 1024, 1024
      %25 = vsyncadd [#allocation6], %s24
      %s26 = sshll.u32 [#allocation5], 4
      %s27 = int_to_ptr.vmem [resolvable:$true] %s26
      %32 = dma.hbm_to_vmem [thread:$0]  %s1, 1024, %s27, [#allocation6], 128, 128, 8
    $region9: #{tpu_custom_call.1} parent=1 // pred_fallthru
      _
    // Predicated region
    $region10: #{tpu_custom_call.1} parent=1 // pred_check
      _
    $region11: #{tpu_custom_call.1} parent=1 // pred_check_branch
      %34 = sbr.rel (0) target = $region13
    $region12: #{tpu_custom_call.1} parent=1 // pred_region
      _
    $region13: #{tpu_custom_call.1} parent=1 // pred_fallthru
      _
    // Predicated region
    $region14: #{tpu_custom_call.1} parent=1 // pred_check
      _
    $region15: #{tpu_custom_call.1} parent=1 // pred_check_branch
      %36 = sbr.rel (0) target = $region17
    $region16: #{tpu_custom_call.1} parent=1 // pred_region
      %37 = dma.done [#allocation3], 128
    $region17: #{tpu_custom_call.1} parent=1 // pred_fallthru
      _
    // Predicated region
    $region18: #{tpu_custom_call.1} parent=1 // pred_check
      _
    $region19: #{tpu_custom_call.1} parent=1 // pred_check_branch
      %39 = sbr.rel (0) target = $region21
    $region20: #{tpu_custom_call.1} parent=1 // pred_region
      %40 = dma.done [#allocation6], 1024
    $region21: #{tpu_custom_call.1} parent=1 // pred_fallthru
      _
    %v41 = vld [vmem:[#allocation2] sm:$0xff]
    %v42 = vld [vmem:[#allocation5] sm:$0xff]
    %v43 = vld [vmem:[#allocation5 + $0x8] sm:$0xff]
    %v44 = vld [vmem:[#allocation5 + $0x10] sm:$0xff]
    %v45 = vld [vmem:[#allocation5 + $0x18] sm:$0xff]
    %v46 = vld [vmem:[#allocation5 + $0x20] sm:$0xff]
    %v47 = vld [vmem:[#allocation5 + $0x28] sm:$0xff]
    %v48 = vld [vmem:[#allocation5 + $0x30] sm:$0xff]
    %v49 = vld [vmem:[#allocation5 + $0x38] sm:$0xff]
    %v50 = vld [vmem:[%s2] sm:$0x1]
    %v52 = vlaneseq
    %v53 = vshrl.u32 %v52, 7
    %v54 = vsub.s32 0, %v53
    %v55 = vrot.slane %v50, %v54
    %vm57 = vcmask 523264
    %v59 = vsel %vm57, %v41, 0
    %61 = vmatprep.subr.mxu0 0.0
    %62 = vmatpush1.msra.mxu0 0.0
    %63 = vmatprep.subr.mxu0 0.0
    %64 = vmatpush1.msra.mxu0 0.0
    %65 = vmatprep.subr.mxu0 0.0
    %66 = vmatpush1.msra.mxu0 0.0
    %67 = vmatprep.subr.mxu0 0.0
    %68 = vmatpush1.msra.mxu0 0.0
    %69 = vmatprep.subr.mxu0 0.0
    %70 = vmatpush1.msra.mxu0 0.0
    %71 = vmatprep.subr.mxu0 0.0
    %72 = vmatpush1.msra.mxu0 0.0
    %73 = vmatprep.subr.mxu0 0.0
    %74 = vmatpush1.msra.mxu0 0.0
    %75 = vmatprep.subr.mxu0 0.0
    %76 = vmatpush1.msra.mxu0 0.0
    %77 = vmatprep.subr.mxu0 0.0
    %78 = vmatpush1.msra.mxu0 %v49
    %79 = vmatprep.subr.mxu0 0.0
    %80 = vmatpush1.msra.mxu0 %v48
    %81 = vmatprep.subr.mxu0 0.0
    %82 = vmatpush1.msra.mxu0 %v47
    %83 = vmatprep.subr.mxu0 0.0
    %84 = vmatpush1.msra.mxu0 %v46
    %85 = vmatprep.subr.mxu0 0.0
    %86 = vmatpush1.msra.mxu0 %v45
    %87 = vmatprep.subr.mxu0 0.0
    %88 = vmatpush1.msra.mxu0 %v44
    %89 = vmatprep.subr.mxu0 0.0
    %90 = vmatpush1.msra.mxu0 %v43
    %91 = vmatprep.subr.mxu0 0.0
    %92 = vmatpush1.msra.mxu0 %v42
    %93 = vmatprep.subr.mxu0 0.0
    %94 = vmatpush2.msra.mxu0 0.0
    %95 = vmatprep.subr.mxu0 0.0
    %96 = vmatpush2.msra.mxu0 0.0
    %97 = vmatprep.subr.mxu0 0.0
    %98 = vmatpush2.msra.mxu0 0.0
    %99 = vmatprep.subr.mxu0 0.0
    %100 = vmatpush2.msra.mxu0 0.0
    %101 = vmatprep.subr.mxu0 0.0
    %102 = vmatpush2.msra.mxu0 0.0
    %103 = vmatprep.subr.mxu0 0.0
    %104 = vmatpush2.msra.mxu0 0.0
    %105 = vmatprep.subr.mxu0 0.0
    %106 = vmatpush2.msra.mxu0 0.0
    %107 = vmatprep.subr.mxu0 0.0
    %108 = vmatpush2.msra.mxu0 0.0
    %109 = vmatprep.subr.mxu0 0.0
    %110 = vmatpush2.msra.mxu0 0.0
    %111 = vmatprep.subr.mxu0 0.0
    %112 = vmatpush2.msra.mxu0 0.0
    %113 = vmatprep.subr.mxu0 0.0
    %114 = vmatpush2.msra.mxu0 0.0
    %115 = vmatprep.subr.mxu0 0.0
    %116 = vmatpush2.msra.mxu0 0.0
    %117 = vmatprep.subr.mxu0 0.0
    %118 = vmatpush2.msra.mxu0 0.0
    %119 = vmatprep.subr.mxu0 0.0
    %120 = vmatpush2.msra.mxu0 0.0
    %121 = vmatprep.subr.mxu0 0.0
    %122 = vmatpush2.msra.mxu0 0.0
    %123 = vmatprep.subr.mxu0 0.0
    %124 = vmatpush2.msra.mxu0 0.0
    %125 = vmatprep.mubr.f32.mxu0 0.0
    %126 = vmatmul.mubr.f32.gmra.mxu0 %v59
    %v127 = vpop.f32.mrf.mxu0
    %v128 = vadd.f32 %v55, %v127
    %v129 = vpop.f32.mrf.mxu0
    %130 = vdwg.mxu0
    %131 = vst [vmem:[#allocation7] sm:$0xff] %v128
    // Predicated region
    $region22: #{tpu_custom_call.1} parent=1 // pred_check
      _
    $region23: #{tpu_custom_call.1} parent=1 // pred_check_branch
      %133 = sbr.rel (0) target = $region25
    $region24: #{tpu_custom_call.1} parent=1 // pred_region
      %s135 = ssub.s32 128, 128
      %136 = vsyncadd [#allocation4], %s135
      %s138 = sshll.u32 [#allocation7], 4
      %s139 = int_to_ptr.vmem [resolvable:$true] %s138
      %141 = dma.vmem_to_hbm [thread:$0]  %s139, 128, %s3, [#allocation4]
    $region25: #{tpu_custom_call.1} parent=1 // pred_fallthru
      _
    // Predicated region
    $region26: #{tpu_custom_call.1} parent=1 // pred_check
      _
    $region27: #{tpu_custom_call.1} parent=1 // pred_check_branch
      %143 = sbr.rel (0) target = $region29
    $region28: #{tpu_custom_call.1} parent=1 // pred_region
      %144 = dma.done [#allocation4], 128
    $region29: #{tpu_custom_call.1} parent=1 // pred_fallthru
      _
    %145 = vsyncpa [#allocation3], 1
    %146 = vsyncpa [#allocation6], 1
    %147 = vsyncpa [#allocation4], 1

</llo_original>
